<compile_context>
chip_gen: v5e
topology: v5e:2x2
jax: 0.10.0
libtpu: 0.0.40
codegen_flags: <defaults>
</compile_context>

<pallas_src>
import math

import jax
import jax.numpy as jnp
from jax.experimental import pallas as pl
from jax.experimental.pallas import tpu as pltpu

# ---------------- module configuration (small synthetic shapes) ----------------
C_IN = 4                 # input feature channels
POS_D = 3                # 3-D coordinates
F_IN = C_IN + POS_D      # PointNetConv message input = [x_j, pos_j - pos_i]
F_PAD = 8                # F_IN zero-padded to a sublane-aligned contraction dim
HID = 32                 # nn = Linear(F_IN, HID) -> ReLU -> Linear(HID, C_OUT)
C_OUT = 64               # plain last layer (MLP plain_last=True semantics)
RATIO = 0.5              # SAModule ratio
R = 0.75                 # SAModule radius
K = 8                    # dense neighbor slots (<= max_num_neighbors=64)


# ----------------------------- Pallas kernel -----------------------------------
def _sa_conv_kernel(feats_ref, w1_ref, b1_ref, w2_ref, b2_ref, out_ref):
    """Single-step PointNetConv: per-edge MLP on K*S flattened rows + max over K.

    feats_ref: (K*S, F_PAD) bf16, rows ordered k-major (row = k*S + s)
    w1: (F_PAD, HID) bf16   b1: (1, HID)   f32
    w2: (HID, C_OUT) bf16   b2: (1, C_OUT) f32
    out_ref: (S, C_OUT) f32
    """
    s = out_ref.shape[0]
    kk = feats_ref.shape[0] // s

    # Edge MLP on the whole [K*S, F_PAD] slab: one matmul pair on the MXU,
    # bf16 inputs, f32 accumulation; elementwise math stays f32 on the VPU.
    h = jnp.dot(feats_ref[...], w1_ref[...], preferred_element_type=jnp.float32)
    h = jnp.maximum(h + b1_ref[...], 0.0)                               # ReLU
    h = jnp.dot(h.astype(w2_ref.dtype), w2_ref[...],
                preferred_element_type=jnp.float32) + b2_ref[...]
    # plain last layer: no activation after the second linear.

    # Max aggregation over the K neighbor slots via static, sublane-aligned
    # slices (unrolled at trace time; no mask / -inf path needed).
    acc = h[0:s]
    for j in range(1, kk):
        acc = jnp.maximum(acc, h[j * s:(j + 1) * s])
    out_ref[...] = acc


def pointnet_conv_pallas(feats_mf, w1, b1, w2, b2, n_centers):
    vmem = pl.BlockSpec(memory_space=pltpu.MemorySpace.VMEM)
    # Single invocation (no grid): the whole problem fits one VMEM block.
    # TODO(synk): for realistic point counts, add a grid over S tiles
    # (block rows >= 128/256) marked "parallel" so v7x's two TensorCores split
    # the centers, and size tiles for its 64 MiB VMEM.
    return pl.pallas_call(
        _sa_conv_kernel,
        out_shape=jax.ShapeDtypeStruct((n_centers, C_OUT), jnp.float32),
        in_specs=[vmem, vmem, vmem, vmem, vmem],
        out_specs=vmem,
    )(feats_mf, w1, b1, w2, b2)


# ------------------------------ glue (plain JAX) --------------------------------
def fps_one_graph(pos_g, n_samples):
    """Farthest point sampling within one graph (deterministic start at point 0).
    # TODO(synk): PyG fps() uses a random start point by default (random_start=True).
    """
    n = pos_g.shape[0]

    def body(i, carry):
        dists, sel = carry
        last = sel[i - 1]
        d = jnp.sum((pos_g - pos_g[last]) ** 2, axis=-1)
        dists = jnp.minimum(dists, d)
        sel = sel.at[i].set(jnp.argmax(dists).astype(jnp.int32))
        return dists, sel

    dists0 = jnp.full((n,), jnp.inf, jnp.float32)
    sel0 = jnp.zeros((n_samples,), jnp.int32)
    _, sel = jax.lax.fori_loop(1, n_samples, body, (dists0, sel0))
    return sel


def build_dense_neighbors(pos, batch, centers, r, k):
    """Brute-force radius query -> dense [S, K] neighbor indices (no mask).

    Invalid slots (fewer than K in-radius neighbors) are clamped to the center
    itself, which is always a valid neighbor (distance 0 <= r), so the max
    aggregation result is unchanged.  K >= per-graph point count here, so the
    max_num_neighbors=64 truncation in PyG's radius() never triggers."""
    d2 = jnp.sum((pos[centers][:, None, :] - pos[None, :, :]) ** 2, axis=-1)   # [S, N]
    same = batch[centers][:, None] == batch[None, :]
    key = jnp.where((d2 <= r * r) & same, d2, jnp.inf)
    neg_d2, order = jax.lax.top_k(-key, k)                                     # K nearest
    invalid = jnp.isinf(neg_d2)                                                # empty slot
    order = jnp.where(invalid, centers[:, None].astype(order.dtype), order)
    return order.astype(jnp.int32)


def sa_module_forward(params, x, pos, batch, graph_sizes):
    w1, b1, w2, b2 = params

    # 1) fps per graph (batch vector is contiguous per graph)
    centers, off = [], 0
    for n_g in graph_sizes:
        ns = int(math.ceil(RATIO * n_g))
        centers.append(fps_one_graph(pos[off:off + n_g], ns) + off)
        off += n_g
    idx = jnp.concatenate(centers)                                             # [S]
    n_centers = idx.shape[0]

    # 2) dense radius neighborhoods, invalid slots clamped to self (maskless)
    nbr_idx = build_dense_neighbors(pos, batch, idx, R, K)                     # [S, K]

    # 3) gather PointNetConv message inputs [x_j, pos_j - pos_i], k-major rows,
    #    zero-padded to F_PAD so the matmul contraction dim is aligned.
    nbr_t = nbr_idx.T                                                          # [K, S]
    x_j = x[nbr_t]                                                             # [K, S, C_IN]
    rel = pos[nbr_t] - pos[idx][None, :, :]                                    # [K, S, 3]
    pad = jnp.zeros((K, n_centers, F_PAD - F_IN), jnp.float32)
    feats = jnp.concatenate([x_j, rel, pad], axis=-1)                          # [K, S, F_PAD]
    feats_mf = feats.reshape(K * n_centers, F_PAD).astype(jnp.bfloat16)        # [K*S, F_PAD]

    # 4) hot path in Pallas: fused per-edge MLP + max aggregation, one step.
    x_out = pointnet_conv_pallas(feats_mf, w1, b1, w2, b2, n_centers)          # [S, C_OUT]
    return x_out, pos[idx], batch[idx]


def init_params(key):
    k1, k2 = jax.random.split(key)
    w1 = jax.random.normal(k1, (F_IN, HID), jnp.float32) * (1.0 / jnp.sqrt(F_IN))
    w1 = jnp.concatenate([w1, jnp.zeros((F_PAD - F_IN, HID), jnp.float32)], axis=0)
    b1 = jnp.full((1, HID), 0.01, jnp.float32)
    w2 = jax.random.normal(k2, (HID, C_OUT), jnp.float32) * (1.0 / jnp.sqrt(HID))
    b2 = jnp.full((1, C_OUT), 0.01, jnp.float32)
    # TODO(synk): a full PyG MLP nn would also include BatchNorm on the hidden
    # layer; this module's user-supplied nn is Linear->ReLU->Linear (plain last).
    return w1.astype(jnp.bfloat16), b1, w2.astype(jnp.bfloat16), b2


if __name__ == "__main__":
    key = jax.random.PRNGKey(0)
    kx, kp, kw = jax.random.split(key, 3)

    graph_sizes = (8, 8)                 # 2 graphs x 8 points
    N = sum(graph_sizes)
    x = jax.random.normal(kx, (N, C_IN), jnp.float32)
    pos = jax.random.uniform(kp, (N, POS_D), jnp.float32)
    batch = jnp.concatenate(
        [jnp.full((n,), i, jnp.int32) for i, n in enumerate(graph_sizes)]
    )

    params = init_params(kw)
    x_out, pos_out, batch_out = sa_module_forward(params, x, pos, batch, graph_sizes)
    jax.block_until_ready((x_out, pos_out, batch_out))

    S = sum(int(math.ceil(RATIO * n)) for n in graph_sizes)
    assert x_out.shape == (S, C_OUT) and pos_out.shape == (S, POS_D) and batch_out.shape == (S,)
    assert bool(jnp.all(jnp.isfinite(x_out)))
    print("KERNEL_OK")
</pallas_src>

<mosaic_0001>
module attributes {stable_mosaic.version = 11 : i64} {
  func.func @_sa_conv_kernel(%arg0: memref<64x8xbf16, #tpu.memory_space<vmem>>, %arg1: memref<8x32xbf16, #tpu.memory_space<vmem>>, %arg2: memref<1x32xf32, #tpu.memory_space<vmem>>, %arg3: memref<32x64xbf16, #tpu.memory_space<vmem>>, %arg4: memref<1x64xf32, #tpu.memory_space<vmem>>, %arg5: memref<8x64xf32, #tpu.memory_space<vmem>>) attributes {dimension_semantics = [], scalar_prefetch = 0 : i64, scratch_operands = 0 : i64, tpu.core_type = #tpu.core_type<tc>} {
    %c0 = arith.constant 0 : index
    %c0_0 = arith.constant 0 : index
    %0 = vector.load %arg0[%c0, %c0_0] : memref<64x8xbf16, #tpu.memory_space<vmem>>, vector<64x8xbf16>
    %c0_1 = arith.constant 0 : index
    %c0_2 = arith.constant 0 : index
    %1 = vector.load %arg1[%c0_1, %c0_2] : memref<8x32xbf16, #tpu.memory_space<vmem>>, vector<8x32xbf16>
    %cst = arith.constant dense<0.000000e+00> : vector<64x32xf32>
    %2 = tpu.matmul %0, %1, %cst {dimension_numbers = #tpu.dot_dimension_numbers<[1], [0], [0], [1], [0, 0, 1, 1], [], []>} : vector<64x8xbf16>, vector<8x32xbf16>, vector<64x32xf32> -> vector<64x32xf32>
    %c0_3 = arith.constant 0 : index
    %c0_4 = arith.constant 0 : index
    %3 = vector.load %arg2[%c0_3, %c0_4] : memref<1x32xf32, #tpu.memory_space<vmem>>, vector<1x32xf32>
    %4 = vector.broadcast %3 : vector<1x32xf32> to vector<64x32xf32>
    %5 = arith.addf %2, %4 : vector<64x32xf32>
    %cst_5 = arith.constant 0.000000e+00 : f32
    %6 = vector.broadcast %cst_5 : f32 to vector<64x32xf32>
    %7 = arith.maximumf %5, %6 : vector<64x32xf32>
    %8 = arith.truncf %7 : vector<64x32xf32> to vector<64x32xbf16>
    %c0_6 = arith.constant 0 : index
    %c0_7 = arith.constant 0 : index
    %9 = vector.load %arg3[%c0_6, %c0_7] : memref<32x64xbf16, #tpu.memory_space<vmem>>, vector<32x64xbf16>
    %cst_8 = arith.constant dense<0.000000e+00> : vector<64x64xf32>
    %10 = tpu.matmul %8, %9, %cst_8 {dimension_numbers = #tpu.dot_dimension_numbers<[1], [0], [0], [1], [0, 0, 1, 1], [], []>} : vector<64x32xbf16>, vector<32x64xbf16>, vector<64x64xf32> -> vector<64x64xf32>
    %c0_9 = arith.constant 0 : index
    %c0_10 = arith.constant 0 : index
    %11 = vector.load %arg4[%c0_9, %c0_10] : memref<1x64xf32, #tpu.memory_space<vmem>>, vector<1x64xf32>
    %12 = vector.broadcast %11 : vector<1x64xf32> to vector<64x64xf32>
    %13 = arith.addf %10, %12 : vector<64x64xf32>
    %14 = vector.extract_strided_slice %13 {offsets = [0, 0], sizes = [8, 64], strides = [1, 1]} : vector<64x64xf32> to vector<8x64xf32>
    %15 = vector.extract_strided_slice %13 {offsets = [8, 0], sizes = [8, 64], strides = [1, 1]} : vector<64x64xf32> to vector<8x64xf32>
    %16 = arith.maximumf %14, %15 : vector<8x64xf32>
    %17 = vector.extract_strided_slice %13 {offsets = [16, 0], sizes = [8, 64], strides = [1, 1]} : vector<64x64xf32> to vector<8x64xf32>
    %18 = arith.maximumf %16, %17 : vector<8x64xf32>
    %19 = vector.extract_strided_slice %13 {offsets = [24, 0], sizes = [8, 64], strides = [1, 1]} : vector<64x64xf32> to vector<8x64xf32>
    %20 = arith.maximumf %18, %19 : vector<8x64xf32>
    %21 = vector.extract_strided_slice %13 {offsets = [32, 0], sizes = [8, 64], strides = [1, 1]} : vector<64x64xf32> to vector<8x64xf32>
    %22 = arith.maximumf %20, %21 : vector<8x64xf32>
    %23 = vector.extract_strided_slice %13 {offsets = [40, 0], sizes = [8, 64], strides = [1, 1]} : vector<64x64xf32> to vector<8x64xf32>
    %24 = arith.maximumf %22, %23 : vector<8x64xf32>
    %25 = vector.extract_strided_slice %13 {offsets = [48, 0], sizes = [8, 64], strides = [1, 1]} : vector<64x64xf32> to vector<8x64xf32>
    %26 = arith.maximumf %24, %25 : vector<8x64xf32>
    %27 = vector.extract_strided_slice %13 {offsets = [56, 0], sizes = [8, 64], strides = [1, 1]} : vector<64x64xf32> to vector<8x64xf32>
    %28 = arith.maximumf %26, %27 : vector<8x64xf32>
    %c0_11 = arith.constant 0 : index
    %c0_12 = arith.constant 0 : index
    %29 = vector.load %arg5[%c0_11, %c0_12] : memref<8x64xf32, #tpu.memory_space<vmem>>, vector<8x64xf32>
    tpu.vector_store %arg5[%c0_11, %c0_12], %28 {strides = array<i32>} : memref<8x64xf32, #tpu.memory_space<vmem>>, vector<8x64xf32>,
    return
  }
}

</mosaic_0001>

<llo_original>
// kernel: tpu_custom_call.1
$region0: #{tpu_custom_call.1}
  #allocation0 [shape = 'u32[]', space=smem, size = 0x4, offset = 0x4, fixed_abs, tag = 'smem constant byte address 0x4 - core index']
  #allocation1 [shape = 'u32[72,128]{1,0:T(1,128)}', space=vmem, size = 0x9000, scoped, tag = 'internal scratch']
  %s0 = inlined_call_operand.vmem [shape: bf16[64,8], index: 0, kind: input, shape index: {}]
  %s1 = inlined_call_operand.vmem [shape: bf16[8,32], index: 1, kind: input, shape index: {}]
  %s2 = inlined_call_operand.vmem [shape: f32[1,32], index: 2, kind: input, shape index: {}]
  %s3 = inlined_call_operand.vmem [shape: bf16[32,64], index: 3, kind: input, shape index: {}]
  %s4 = inlined_call_operand.vmem [shape: f32[1,64], index: 4, kind: input, shape index: {}]
  %s5 = inlined_call_operand.hbm [shape: f32[8,64], index: 5, kind: output, shape index: {}]
  %s6 = sld [smem:[#allocation0]]
  $region30: #{tpu_custom_call.1} parent=0
    _
  %s8 = ssub.s32 1, %s6
  %s9 = scalar_select 0, %s8, %s6
  $region1: #{tpu_custom_call.1} parent=0
    #allocation2 [shape = 'u8[4096]{0}', space=vmem, size = 0x1000, scoped, tag = 'output window, operand 0, single buffered']
    #allocation3 [shape = 's32[1]{0}', space=sflag, size = 0x4, scoped, tag = 'scoped memory for tpu_custom_call.1']
    %10 = vsyncpa [#allocation3], 0
    // Predicated region
    $region2: #{tpu_custom_call.1} parent=1 // pred_check
      _
    $region3: #{tpu_custom_call.1} parent=1 // pred_check_branch
      %12 = sbr.rel (0) target = $region5
    $region4: #{tpu_custom_call.1} parent=1 // pred_region
      _
    $region5: #{tpu_custom_call.1} parent=1 // pred_fallthru
      _
    // Predicated region
    $region6: #{tpu_custom_call.1} parent=1 // pred_check
      _
    $region7: #{tpu_custom_call.1} parent=1 // pred_check_branch
      %14 = sbr.rel (0) target = $region9
    $region8: #{tpu_custom_call.1} parent=1 // pred_region
      _
    $region9: #{tpu_custom_call.1} parent=1 // pred_fallthru
      _
    // Predicated region
    $region10: #{tpu_custom_call.1} parent=1 // pred_check
      _
    $region11: #{tpu_custom_call.1} parent=1 // pred_check_branch
      %16 = sbr.rel (0) target = $region13
    $region12: #{tpu_custom_call.1} parent=1 // pred_region
      _
    $region13: #{tpu_custom_call.1} parent=1 // pred_fallthru
      _
    // Predicated region
    $region14: #{tpu_custom_call.1} parent=1 // pred_check
      _
    $region15: #{tpu_custom_call.1} parent=1 // pred_check_branch
      %18 = sbr.rel (0) target = $region17
    $region16: #{tpu_custom_call.1} parent=1 // pred_region
      _
    $region17: #{tpu_custom_call.1} parent=1 // pred_fallthru
      _
    // Predicated region
    $region18: #{tpu_custom_call.1} parent=1 // pred_check
      _
    $region19: #{tpu_custom_call.1} parent=1 // pred_check_branch
      %20 = sbr.rel (0) target = $region21
    $region20: #{tpu_custom_call.1} parent=1 // pred_region
      _
    $region21: #{tpu_custom_call.1} parent=1 // pred_fallthru
      _
    %v22 = vld [vmem:[%s0] sm:$0xf]
    %v23 = vld [vmem:[%s0 + $0x4] sm:$0xf]
    %v24 = vld [vmem:[%s0 + $0x8] sm:$0xf]
    %v25 = vld [vmem:[%s0 + $0xc] sm:$0xf]
    %v26 = vld [vmem:[%s0 + $0x10] sm:$0xf]
    %v27 = vld [vmem:[%s0 + $0x14] sm:$0xf]
    %v28 = vld [vmem:[%s0 + $0x18] sm:$0xf]
    %v29 = vld [vmem:[%s0 + $0x1c] sm:$0xf]
    %v30 = vld [vmem:[%s1] sm:$0xf]
    %v31 = vld [vmem:[%s2] sm:$0x1]
    %v33 = vperm.slane %v31, 0
    %v43 = vunpack.c.l.b16 %v22
    %v44 = vunpack.c.l.b16 %v23
    %v45 = vunpack.c.l.b16 %v24
    %v46 = vunpack.c.l.b16 %v25
    %v47 = vunpack.c.l.b16 %v26
    %v48 = vunpack.c.l.b16 %v27
    %v49 = vunpack.c.l.b16 %v28
    %v50 = vunpack.c.l.b16 %v29
    %v51 = vpack.c.b16 %v44, %v43
    %v52 = vpack.c.b16 %v46, %v45
    %v53 = vpack.c.b16 %v48, %v47
    %v54 = vpack.c.b16 %v50, %v49
    %vm55 = vcmask 64512
    %v57 = vsel %vm55, %v51, 0
    %v60 = vsel %vm55, %v52, 0
    %v63 = vsel %vm55, %v53, 0
    %v66 = vsel %vm55, %v54, 0
    %vm68 = vcmask 1043456
    %v70 = vsel %vm68, %v30, 0
    %72 = vmatpush.bf16.msra.mxu0 0
    %73 = vmatpush.bf16.msra.mxu0 0
    %74 = vmatpush.bf16.msra.mxu0 0
    %75 = vmatpush.bf16.msra.mxu0 0
    %76 = vmatpush.bf16.msra.mxu0 0
    %77 = vmatpush.bf16.msra.mxu0 0
    %78 = vmatpush.bf16.msra.mxu0 0
    %79 = vmatpush.bf16.msra.mxu0 %v70
    %80 = vmatmul.bf16.gmra.mxu0 %v57
    %v81 = vpop.f32.mrf.mxu0
    %v82 = vadd.f32 %v33, %v81
    %v83 = vpop.f32.mrf.mxu0
    %v84 = vadd.f32 %v33, %v83
    %85 = vmatmul.bf16.gmra.mxu0 %v60
    %v86 = vpop.f32.mrf.mxu0
    %v87 = vadd.f32 %v33, %v86
    %v88 = vpop.f32.mrf.mxu0
    %v89 = vadd.f32 %v33, %v88
    %90 = vmatmul.bf16.gmra.mxu0 %v63
    %v91 = vpop.f32.mrf.mxu0
    %v92 = vadd.f32 %v33, %v91
    %v93 = vpop.f32.mrf.mxu0
    %v94 = vadd.f32 %v33, %v93
    %95 = vmatmul.bf16.gmra.mxu0 %v66
    %v96 = vpop.f32.mrf.mxu0
    %v97 = vadd.f32 %v33, %v96
    %v98 = vpop.f32.mrf.mxu0
    %v99 = vadd.f32 %v33, %v98
    %100 = vdwg.mxu0
    %v101 = vmax.f32 %v82, 0.0
    %v102 = vmax.f32 %v84, 0.0
    %v103 = vmax.f32 %v87, 0.0
    %v104 = vmax.f32 %v89, 0.0
    %v105 = vmax.f32 %v92, 0.0
    %v106 = vmax.f32 %v94, 0.0
    %v107 = vmax.f32 %v97, 0.0
    %v108 = vmax.f32 %v99, 0.0
    %v109 = vpack.c.bf16 %v102, %v101
    %v110 = vpack.c.bf16 %v104, %v103
    %v111 = vpack.c.bf16 %v106, %v105
    %v112 = vpack.c.bf16 %v108, %v107
    %v113 = vld [vmem:[%s3] sm:$0xf]
    %v114 = vld [vmem:[%s3 + $0x4] sm:$0xf]
    %v115 = vld [vmem:[%s3 + $0x8] sm:$0xf]
    %v116 = vld [vmem:[%s3 + $0xc] sm:$0xf]
    %v117 = vld [vmem:[%s4] sm:$0x1]
    %v119 = vperm.slane %v117, 0
    %v125 = vunpack.c.l.b16 %v113
    %v126 = vunpack.c.l.b16 %v114
    %v127 = vunpack.c.l.b16 %v115
    %v128 = vunpack.c.l.b16 %v116
    %v129 = vpack.c.b16 %v126, %v125
    %v130 = vpack.c.b16 %v128, %v127
    %vm133 = vcmask 261120
    %v135 = vsel %vm133, %v109, 0
    %v138 = vsel %vm133, %v110, 0
    %v141 = vsel %vm133, %v111, 0
    %v144 = vsel %vm133, %v112, 0
    %146 = vmatpush.bf16.msra.mxu0 0
    %147 = vmatpush.bf16.msra.mxu0 0
    %148 = vmatpush.bf16.msra.mxu0 0
    %149 = vmatpush.bf16.msra.mxu0 0
    %150 = vmatpush.bf16.msra.mxu0 0
    %151 = vmatpush.bf16.msra.mxu0 0
    %152 = vmatpush.bf16.msra.mxu0 %v130
    %153 = vmatpush.bf16.msra.mxu0 %v129
    %154 = vmatmul.bf16.gmra.mxu0 %v135
    %v155 = vpop.f32.mrf.mxu0
    %v156 = vadd.f32 %v119, %v155
    %v157 = vpop.f32.mrf.mxu0
    %v158 = vadd.f32 %v119, %v157
    %159 = vmatmul.bf16.gmra.mxu0 %v138
    %v160 = vpop.f32.mrf.mxu0
    %v161 = vadd.f32 %v119, %v160
    %v162 = vpop.f32.mrf.mxu0
    %v163 = vadd.f32 %v119, %v162
    %164 = vmatmul.bf16.gmra.mxu0 %v141
    %v165 = vpop.f32.mrf.mxu0
    %v166 = vadd.f32 %v119, %v165
    %v167 = vpop.f32.mrf.mxu0
    %v168 = vadd.f32 %v119, %v167
    %169 = vmatmul.bf16.gmra.mxu0 %v144
    %v170 = vpop.f32.mrf.mxu0
    %v171 = vadd.f32 %v119, %v170
    %v172 = vpop.f32.mrf.mxu0
    %v173 = vadd.f32 %v119, %v172
    %174 = vdwg.mxu0
    %v175 = vmax.f32 %v156, %v158
    %v176 = vmax.f32 %v175, %v161
    %v177 = vmax.f32 %v176, %v163
    %v178 = vmax.f32 %v177, %v166
    %v179 = vmax.f32 %v178, %v168
    %v180 = vmax.f32 %v179, %v171
    %v181 = vmax.f32 %v180, %v173
    %vm182 = vcmask 523264
    %183 = vst.msk [vmem:[#allocation2] sm:$0xff] %vm182, %v181
    // Predicated region
    $region22: #{tpu_custom_call.1} parent=1 // pred_check
      _
    $region23: #{tpu_custom_call.1} parent=1 // pred_check_branch
      %185 = sbr.rel (0) target = $region25
    $region24: #{tpu_custom_call.1} parent=1 // pred_region
      %187 = vsyncadd [#allocation3], 0
      %s189 = sshll.u32 [#allocation2], 4
      %s190 = int_to_ptr.vmem [resolvable:$true] %s189
      %s191 = sshll.u32 %s5, 4
      %s192 = int_to_ptr.hbm [resolvable:$true] %s191
      %194 = dma.vmem_to_hbm [thread:$0]  %s190, 128, %s192, [#allocation3]
    $region25: #{tpu_custom_call.1} parent=1 // pred_fallthru
      _
    // Predicated region
    $region26: #{tpu_custom_call.1} parent=1 // pred_check
      _
    $region27: #{tpu_custom_call.1} parent=1 // pred_check_branch
      %196 = sbr.rel (0) target = $region29
    $region28: #{tpu_custom_call.1} parent=1 // pred_region
      %198 = dma.done [#allocation3], 128
    $region29: #{tpu_custom_call.1} parent=1 // pred_fallthru
      _
    %199 = vsyncpa [#allocation3], 1

</llo_original>
